<compile_context>
chip_gen: v6e
topology: v6e:2x2x1
jax: 0.10.0
libtpu: 0.0.40
codegen_flags: <defaults>
</compile_context>

<pallas_src>
import functools

import jax
import jax.numpy as jnp
from jax.experimental import pallas as pl
from jax.experimental.pallas import tpu as pltpu


# ---------------------------------------------------------------------------
# Pallas kernel:  out = block(x) + x @ W + b        (W VMEM-resident, no k axis)
# ---------------------------------------------------------------------------
def _comp_kernel(x_ref, w_ref, b_ref, blk_ref, o_ref):
    # In-kernel cast of x to the matmul dtype (bf16 MXU path on v6e/v7x);
    # no-op when the f32 fallback path is selected.
    x = x_ref[...].astype(w_ref.dtype)
    acc = jnp.dot(x, w_ref[...], preferred_element_type=jnp.float32)
    out = blk_ref[...].astype(jnp.float32) + b_ref[...].astype(jnp.float32) + acc
    o_ref[...] = out.astype(o_ref.dtype)


def _choose_tile(dim, target, align):
    """Largest tile <= target that is a multiple of `align` and divides `dim`,
    or the full dim when dim already fits / no aligned divisor exists."""
    if dim <= target:
        return dim
    t = (min(target, dim) // align) * align
    while t >= align:
        if dim % t == 0:
            return t
        t -= align
    return dim  # fallback: full extent (always legal)


def _vmem_capacity_bytes():
    try:
        return int(pltpu.get_tpu_info().vmem_capacity_bytes)
    except Exception:
        return 64 * 1024 * 1024  # conservative default (v7x per-TC VMEM)


def compensation_matmul(x2d, w, b, block_out2d, *, tm=None, tn=None,
                        use_bf16_matmul=True):
    """out = block_out2d + x2d @ w + b, fused in one Pallas kernel.

    x2d:          (M, K)   flattened tokens
    w:            (K, N)   lora_weight
    b:            (N,)     lora_bias
    block_out2d:  (M, N)   output of the wrapped block (aliases the result)
    """
    M, K = x2d.shape
    K2, N = w.shape
    assert K == K2
    assert block_out2d.shape == (M, N)
    assert b.shape == (N,)

    out_dtype = x2d.dtype

    # Weight is small (D x D): cast once in the wrapper (halves its HBM read),
    # keep it VMEM-resident inside the kernel.  x is cast in-kernel per tile.
    if use_bf16_matmul and w.dtype == jnp.float32:
        w_mx = w.astype(jnp.bfloat16)
    else:
        w_mx = w
    b2d = b.reshape(1, N).astype(jnp.float32)

    x_bytes = jnp.dtype(x2d.dtype).itemsize
    w_bytes = jnp.dtype(w_mx.dtype).itemsize
    blk_bytes = jnp.dtype(block_out2d.dtype).itemsize
    o_bytes = jnp.dtype(out_dtype).itemsize

    capacity = _vmem_capacity_bytes()
    budget = int(0.6 * capacity)  # leave headroom below physical VMEM

    # Lane-dense output: prefer full-N tiles (whole W resident) when it fits.
    if tn is None:
        if 2 * K * N * w_bytes <= budget // 2:
            tn = N
        else:
            tn = _choose_tile(N, 512, 128)

    def vmem_est(tm_):
        return (2 * tm_ * K * x_bytes          # x tiles (double-buffered)
                + 2 * K * tn * w_bytes         # W (resident; x2 for buffering)
                + 2 * tn * 4                   # bias
                + 2 * tm_ * tn * blk_bytes     # block(x) tiles
                + 2 * tm_ * tn * o_bytes)      # output tiles

    if tm is None:
        target = 1024                          # 512-1024 amortizes grid-step overhead
        tm = _choose_tile(M, target, 8)
        while vmem_est(tm) > budget and target > 8:
            target //= 2
            tm = _choose_tile(M, target, 8)

    if (M % tm) or (N % tn):
        raise ValueError(
            f"tiles must divide dims: M={M}/tm={tm}, N={N}/tn={tn}")

    grid = (M // tm, N // tn)

    vmem_limit = int(min(max(2 * vmem_est(tm), 16 * 1024 * 1024),
                         int(0.75 * capacity)))

    cost = pl.CostEstimate(
        flops=2 * M * N * K,
        bytes_accessed=(M * K * x_bytes + K * N * w_bytes + N * 4
                        + M * N * blk_bytes + M * N * o_bytes),
        transcendentals=0,
    )

    return pl.pallas_call(
        _comp_kernel,
        out_shape=jax.ShapeDtypeStruct((M, N), out_dtype),
        grid_spec=pltpu.PrefetchScalarGridSpec(
            num_scalar_prefetch=0,
            grid=grid,
            in_specs=[
                pl.BlockSpec((tm, K), lambda i, j: (i, 0)),   # x (f32, cast in-kernel)
                pl.BlockSpec((K, tn), lambda i, j: (0, j)),   # lora_weight (resident)
                pl.BlockSpec((1, tn), lambda i, j: (0, j)),   # lora_bias
                pl.BlockSpec((tm, tn), lambda i, j: (i, j)),  # block(x)
            ],
            out_specs=pl.BlockSpec((tm, tn), lambda i, j: (i, j)),
        ),
        compiler_params=pltpu.CompilerParams(
            dimension_semantics=("parallel", "parallel"),
            vmem_limit_bytes=vmem_limit,
        ),
        cost_estimate=cost,
        # block(x) aliases the output: its (i, j) tile is read (DMA'd to VMEM)
        # before the matching output tile is written back.
        input_output_aliases={3: 0},
    )(x2d, w_mx, b2d, block_out2d)


# ---------------------------------------------------------------------------
# Representative wrapped `block` (arbitrary nn.Module in the original code)
# ---------------------------------------------------------------------------
def mlp_block(x, w1, b1, w2, b2):
    h = jax.nn.gelu(x @ w1 + b1)
    return x + h @ w2 + b2  # residual-style ViT-ish block


# ---------------------------------------------------------------------------
# CompensationBlock forward
# ---------------------------------------------------------------------------
def compensation_block_forward(x, params, *, tm=None, tn=None,
                               use_bf16_matmul=True):
    """x: (B, N, D).  out = block(x) + x @ lora_weight + lora_bias."""
    B, Ntok, D = x.shape
    block_out = mlp_block(
        x, params["w1"], params["b1"], params["w2"], params["b2"]
    )
    x2d = x.reshape(B * Ntok, D)
    blk2d = block_out.reshape(B * Ntok, D)
    out2d = compensation_matmul(
        x2d, params["lora_weight"], params["lora_bias"], blk2d,
        tm=tm, tn=tn, use_bf16_matmul=use_bf16_matmul,
    )
    return out2d.reshape(B, Ntok, D)


def reference_forward(x, params):
    block_out = mlp_block(
        x, params["w1"], params["b1"], params["w2"], params["b2"]
    )
    return block_out + x @ params["lora_weight"] + params["lora_bias"]


# ---------------------------------------------------------------------------
# Main
# ---------------------------------------------------------------------------
if __name__ == "__main__":
    # Small but lane-dense shapes: D is a multiple of 128 so output stores are
    # full-lane.  M = B*Ntok = 256 fits a single block (tm = M, tn = N), so the
    # demo runs as one grid step (no per-step overhead), per the review.
    B, Ntok, D = 2, 128, 256
    hidden_mlp = 512

    key = jax.random.PRNGKey(0)
    kx, kw, kb, k1, k2, k3, k4 = jax.random.split(key, 7)

    x = jax.random.normal(kx, (B, Ntok, D), dtype=jnp.float32)

    # Deterministic "linear init" path (r2_score > 0): lora params copied from W, b.
    params = {
        "lora_weight": jax.random.normal(kw, (D, D), dtype=jnp.float32) * 0.05,
        "lora_bias": jax.random.normal(kb, (D,), dtype=jnp.float32) * 0.05,
        # stand-in wrapped block (small MLP) params
        "w1": jax.random.normal(k1, (D, hidden_mlp), dtype=jnp.float32) * 0.05,
        "b1": jax.random.normal(k2, (hidden_mlp,), dtype=jnp.float32) * 0.05,
        "w2": jax.random.normal(k3, (hidden_mlp, D), dtype=jnp.float32) * 0.05,
        "b2": jax.random.normal(k4, (D,), dtype=jnp.float32) * 0.05,
    }

    fwd = jax.jit(functools.partial(compensation_block_forward))
    out = jax.block_until_ready(fwd(x, params))

    ref = reference_forward(x, params)
    assert out.shape == (B, Ntok, D)

    # The kernel feeds the MXU bf16 x / lora_weight (f32 accumulation), so the
    # lora term carries ~1e-3 absolute error vs. the pure-f32 reference.
    max_err = jnp.max(jnp.abs(out - ref))
    assert jnp.allclose(out, ref, atol=5e-2, rtol=5e-2), (
        f"mismatch vs reference, max |err| = {max_err}")

    print("KERNEL_OK")
</pallas_src>

<mosaic_0001>
module attributes {stable_mosaic.version = 11 : i64} {
  func.func @_comp_kernel(%arg0: i32, %arg1: i32, %arg2: memref<256x256xf32, #tpu.memory_space<vmem>>, %arg3: memref<256x256xbf16, #tpu.memory_space<vmem>>, %arg4: memref<1x256xf32, #tpu.memory_space<vmem>>, %arg5: memref<256x256xf32, #tpu.memory_space<vmem>>, %arg6: memref<256x256xf32, #tpu.memory_space<vmem>>) attributes {dimension_semantics = [#tpu.dimension_semantics<parallel>, #tpu.dimension_semantics<parallel>], iteration_bounds = array<i64: 1, 1>, scalar_prefetch = 0 : i64, scratch_operands = 0 : i64, tpu.core_type = #tpu.core_type<tc>, window_params = [{transform_indices = @transform_0, window_bounds = array<i64: 256, 256>}, {transform_indices = @transform_1, window_bounds = array<i64: 256, 256>}, {transform_indices = @transform_2, window_bounds = array<i64: 1, 256>}, {transform_indices = @transform_3, window_bounds = array<i64: 256, 256>}, {transform_indices = @transform_4, window_bounds = array<i64: 256, 256>}]} {
    %c0 = arith.constant 0 : index
    %c0_0 = arith.constant 0 : index
    %0 = vector.load %arg2[%c0, %c0_0] : memref<256x256xf32, #tpu.memory_space<vmem>>, vector<256x256xf32>
    %1 = arith.truncf %0 : vector<256x256xf32> to vector<256x256xbf16>
    %c0_1 = arith.constant 0 : index
    %c0_2 = arith.constant 0 : index
    %2 = vector.load %arg3[%c0_1, %c0_2] : memref<256x256xbf16, #tpu.memory_space<vmem>>, vector<256x256xbf16>
    %cst = arith.constant dense<0.000000e+00> : vector<256x256xf32>
    %3 = tpu.matmul %1, %2, %cst {dimension_numbers = #tpu.dot_dimension_numbers<[1], [0], [0], [1], [0, 0, 1, 1], [], []>} : vector<256x256xbf16>, vector<256x256xbf16>, vector<256x256xf32> -> vector<256x256xf32>
    %c0_3 = arith.constant 0 : index
    %c0_4 = arith.constant 0 : index
    %4 = vector.load %arg5[%c0_3, %c0_4] : memref<256x256xf32, #tpu.memory_space<vmem>>, vector<256x256xf32>
    %c0_5 = arith.constant 0 : index
    %c0_6 = arith.constant 0 : index
    %5 = vector.load %arg4[%c0_5, %c0_6] : memref<1x256xf32, #tpu.memory_space<vmem>>, vector<1x256xf32>
    %6 = vector.broadcast %5 : vector<1x256xf32> to vector<256x256xf32>
    %7 = arith.addf %4, %6 : vector<256x256xf32>
    %8 = arith.addf %7, %3 : vector<256x256xf32>
    %c0_7 = arith.constant 0 : index
    %c0_8 = arith.constant 0 : index
    %9 = vector.load %arg6[%c0_7, %c0_8] : memref<256x256xf32, #tpu.memory_space<vmem>>, vector<256x256xf32>
    tpu.vector_store %arg6[%c0_7, %c0_8], %8 {strides = array<i32>} : memref<256x256xf32, #tpu.memory_space<vmem>>, vector<256x256xf32>,
    return
  }
  func.func @transform_0(%arg0: i32, %arg1: i32) -> (i32, i32) {
    %c0_i32 = arith.constant 0 : i32
    %c0_i32_0 = arith.constant 0 : i32
    return %arg0, %c0_i32 : i32, i32
  }
  func.func @transform_1(%arg0: i32, %arg1: i32) -> (i32, i32) {
    %c0_i32 = arith.constant 0 : i32
    %c0_i32_0 = arith.constant 0 : i32
    return %c0_i32, %arg1 : i32, i32
  }
  func.func @transform_2(%arg0: i32, %arg1: i32) -> (i32, i32) {
    %c0_i32 = arith.constant 0 : i32
    %c0_i32_0 = arith.constant 0 : i32
    return %c0_i32, %arg1 : i32, i32
  }
  func.func @transform_3(%arg0: i32, %arg1: i32) -> (i32, i32) {
    %c0_i32 = arith.constant 0 : i32
    return %arg0, %arg1 : i32, i32
  }
  func.func @transform_4(%arg0: i32, %arg1: i32) -> (i32, i32) {
    %c0_i32 = arith.constant 0 : i32
    return %arg0, %arg1 : i32, i32
  }
}

</mosaic_0001>

<llo_original>
// kernel: compensation_block_forward.1
$region0: #{compensation_block_forward.1}
  #allocation0 [shape = 'u32[]', space=smem, size = 0x4, offset = 0x4, fixed_abs, tag = 'smem constant byte address 0x4 - core index']
  #allocation1 [shape = 'u32[144,128]{1,0:T(1,128)}', space=vmem, size = 0x12000, scoped, tag = 'internal scratch']
  %s0 = inlined_call_operand.vmem [shape: f32[256,256], index: 0, kind: input, shape index: {}]
  %s1 = inlined_call_operand.vmem [shape: bf16[256,256], index: 1, kind: input, shape index: {}]
  %s2 = inlined_call_operand.vmem [shape: f32[1,256], index: 2, kind: input, shape index: {}]
  %s3 = inlined_call_operand.vmem [shape: f32[256,256], index: 3, kind: input, shape index: {}, may-alias: {3,4}]
  %s4 = inlined_call_operand.vmem [shape: f32[256,256], index: 4, kind: output, shape index: {}, may-alias: {3,4}]
  %s5 = sld [smem:[#allocation0]]
  $region26: #{compensation_block_forward.1} parent=0
    _
  %s7 = ssub.s32 1, %s5
  %s8 = scalar_select 0, %s7, %s5
  // Predicated region
  $region2: #{compensation_block_forward.1} parent=0 // pred_check
    _
  $region3: #{compensation_block_forward.1} parent=0 // pred_check_branch
    %10 = sbr.rel (0) target = $region5
  $region4: #{compensation_block_forward.1} parent=0 // pred_region
    _
  $region5: #{compensation_block_forward.1} parent=0 // pred_fallthru
    _
  // Predicated region
  $region6: #{compensation_block_forward.1} parent=0 // pred_check
    _
  $region7: #{compensation_block_forward.1} parent=0 // pred_check_branch
    %12 = sbr.rel (0) target = $region9
  $region8: #{compensation_block_forward.1} parent=0 // pred_region
    _
  $region9: #{compensation_block_forward.1} parent=0 // pred_fallthru
    _
  // Predicated region
  $region10: #{compensation_block_forward.1} parent=0 // pred_check
    _
  $region11: #{compensation_block_forward.1} parent=0 // pred_check_branch
    %14 = sbr.rel (0) target = $region13
  $region12: #{compensation_block_forward.1} parent=0 // pred_region
    _
  $region13: #{compensation_block_forward.1} parent=0 // pred_fallthru
    _
  // Predicated region
  $region14: #{compensation_block_forward.1} parent=0 // pred_check
    _
  $region15: #{compensation_block_forward.1} parent=0 // pred_check_branch
    %16 = sbr.rel (0) target = $region17
  $region16: #{compensation_block_forward.1} parent=0 // pred_region
    _
  $region17: #{compensation_block_forward.1} parent=0 // pred_fallthru
    _
  %v17 = vld [vmem:[%s0] sm:$0xff]
  %v18 = vld [vmem:[%s0 + $0x8] sm:$0xff]
  %v19 = vld [vmem:[%s0 + $0x10] sm:$0xff]
  %v20 = vld [vmem:[%s0 + $0x18] sm:$0xff]
  %v21 = vld [vmem:[%s0 + $0x20] sm:$0xff]
  %v22 = vld [vmem:[%s0 + $0x28] sm:$0xff]
  %v23 = vld [vmem:[%s0 + $0x30] sm:$0xff]
  %v24 = vld [vmem:[%s0 + $0x38] sm:$0xff]
  %v25 = vld [vmem:[%s0 + $0x40] sm:$0xff]
  %v26 = vld [vmem:[%s0 + $0x48] sm:$0xff]
  %v27 = vld [vmem:[%s0 + $0x50] sm:$0xff]
  %v28 = vld [vmem:[%s0 + $0x58] sm:$0xff]
  %v29 = vld [vmem:[%s0 + $0x60] sm:$0xff]
  %v30 = vld [vmem:[%s0 + $0x68] sm:$0xff]
  %v31 = vld [vmem:[%s0 + $0x70] sm:$0xff]
  %v32 = vld [vmem:[%s0 + $0x78] sm:$0xff]
  %v33 = vld [vmem:[%s0 + $0x80] sm:$0xff]
  %v34 = vld [vmem:[%s0 + $0x88] sm:$0xff]
  %v35 = vld [vmem:[%s0 + $0x90] sm:$0xff]
  %v36 = vld [vmem:[%s0 + $0x98] sm:$0xff]
  %v37 = vld [vmem:[%s0 + $0xa0] sm:$0xff]
  %v38 = vld [vmem:[%s0 + $0xa8] sm:$0xff]
  %v39 = vld [vmem:[%s0 + $0xb0] sm:$0xff]
  %v40 = vld [vmem:[%s0 + $0xb8] sm:$0xff]
  %v41 = vld [vmem:[%s0 + $0xc0] sm:$0xff]
  %v42 = vld [vmem:[%s0 + $0xc8] sm:$0xff]
  %v43 = vld [vmem:[%s0 + $0xd0] sm:$0xff]
  %v44 = vld [vmem:[%s0 + $0xd8] sm:$0xff]
  %v45 = vld [vmem:[%s0 + $0xe0] sm:$0xff]
  %v46 = vld [vmem:[%s0 + $0xe8] sm:$0xff]
  %v47 = vld [vmem:[%s0 + $0xf0] sm:$0xff]
  %v48 = vld [vmem:[%s0 + $0xf8] sm:$0xff]
  %v49 = vld [vmem:[%s0 + $0x100] sm:$0xff]
  %v50 = vld [vmem:[%s0 + $0x108] sm:$0xff]
  %v51 = vld [vmem:[%s0 + $0x110] sm:$0xff]
  %v52 = vld [vmem:[%s0 + $0x118] sm:$0xff]
  %v53 = vld [vmem:[%s0 + $0x120] sm:$0xff]
  %v54 = vld [vmem:[%s0 + $0x128] sm:$0xff]
  %v55 = vld [vmem:[%s0 + $0x130] sm:$0xff]
  %v56 = vld [vmem:[%s0 + $0x138] sm:$0xff]
  %v57 = vld [vmem:[%s0 + $0x140] sm:$0xff]
  %v58 = vld [vmem:[%s0 + $0x148] sm:$0xff]
  %v59 = vld [vmem:[%s0 + $0x150] sm:$0xff]
  %v60 = vld [vmem:[%s0 + $0x158] sm:$0xff]
  %v61 = vld [vmem:[%s0 + $0x160] sm:$0xff]
  %v62 = vld [vmem:[%s0 + $0x168] sm:$0xff]
  %v63 = vld [vmem:[%s0 + $0x170] sm:$0xff]
  %v64 = vld [vmem:[%s0 + $0x178] sm:$0xff]
  %v65 = vld [vmem:[%s0 + $0x180] sm:$0xff]
  %v66 = vld [vmem:[%s0 + $0x188] sm:$0xff]
  %v67 = vld [vmem:[%s0 + $0x190] sm:$0xff]
  %v68 = vld [vmem:[%s0 + $0x198] sm:$0xff]
  %v69 = vld [vmem:[%s0 + $0x1a0] sm:$0xff]
  %v70 = vld [vmem:[%s0 + $0x1a8] sm:$0xff]
  %v71 = vld [vmem:[%s0 + $0x1b0] sm:$0xff]
  %v72 = vld [vmem:[%s0 + $0x1b8] sm:$0xff]
  %v73 = vld [vmem:[%s0 + $0x1c0] sm:$0xff]
  %v74 = vld [vmem:[%s0 + $0x1c8] sm:$0xff]
  %v75 = vld [vmem:[%s0 + $0x1d0] sm:$0xff]
  %v76 = vld [vmem:[%s0 + $0x1d8] sm:$0xff]
  %v77 = vld [vmem:[%s0 + $0x1e0] sm:$0xff]
  %v78 = vld [vmem:[%s0 + $0x1e8] sm:$0xff]
  %v79 = vld [vmem:[%s0 + $0x1f0] sm:$0xff]
  %v80 = vld [vmem:[%s0 + $0x1f8] sm:$0xff]
  %v81 = vpack.c.bf16 %v19, %v17
  %v82 = vpack.c.bf16 %v20, %v18
  %v83 = vpack.c.bf16 %v23, %v21
  %v84 = vpack.c.bf16 %v24, %v22
  %v85 = vpack.c.bf16 %v27, %v25
  %v86 = vpack.c.bf16 %v28, %v26
  %v87 = vpack.c.bf16 %v31, %v29
  %v88 = vpack.c.bf16 %v32, %v30
  %v89 = vpack.c.bf16 %v35, %v33
  %v90 = vpack.c.bf16 %v36, %v34
  %v91 = vpack.c.bf16 %v39, %v37
  %v92 = vpack.c.bf16 %v40, %v38
  %v93 = vpack.c.bf16 %v43, %v41
  %v94 = vpack.c.bf16 %v44, %v42
  %v95 = vpack.c.bf16 %v47, %v45
  %v96 = vpack.c.bf16 %v48, %v46
  %v97 = vpack.c.bf16 %v51, %v49
  %v98 = vpack.c.bf16 %v52, %v50
  %v99 = vpack.c.bf16 %v55, %v53
  %v100 = vpack.c.bf16 %v56, %v54
  %v101 = vpack.c.bf16 %v59, %v57
  %v102 = vpack.c.bf16 %v60, %v58
  %v103 = vpack.c.bf16 %v63, %v61
  %v104 = vpack.c.bf16 %v64, %v62
  %v105 = vpack.c.bf16 %v67, %v65
  %v106 = vpack.c.bf16 %v68, %v66
  %v107 = vpack.c.bf16 %v71, %v69
  %v108 = vpack.c.bf16 %v72, %v70
  %v109 = vpack.c.bf16 %v75, %v73
  %v110 = vpack.c.bf16 %v76, %v74
  %v111 = vpack.c.bf16 %v79, %v77
  %v112 = vpack.c.bf16 %v80, %v78
  %v113 = vld [vmem:[%s1] sm:$0xff]
  %v114 = vld [vmem:[%s1 + $0x8] sm:$0xff]
  %v115 = vld [vmem:[%s1 + $0x10] sm:$0xff]
  %v116 = vld [vmem:[%s1 + $0x18] sm:$0xff]
  %v117 = vld [vmem:[%s1 + $0x20] sm:$0xff]
  %v118 = vld [vmem:[%s1 + $0x28] sm:$0xff]
  %v119 = vld [vmem:[%s1 + $0x30] sm:$0xff]
  %v120 = vld [vmem:[%s1 + $0x38] sm:$0xff]
  %v121 = vld [vmem:[%s1 + $0x40] sm:$0xff]
  %v122 = vld [vmem:[%s1 + $0x48] sm:$0xff]
  %v123 = vld [vmem:[%s1 + $0x50] sm:$0xff]
  %v124 = vld [vmem:[%s1 + $0x58] sm:$0xff]
  %v125 = vld [vmem:[%s1 + $0x60] sm:$0xff]
  %v126 = vld [vmem:[%s1 + $0x68] sm:$0xff]
  %v127 = vld [vmem:[%s1 + $0x70] sm:$0xff]
  %v128 = vld [vmem:[%s1 + $0x78] sm:$0xff]
  %v129 = vld [vmem:[%s1 + $0x80] sm:$0xff]
  %v130 = vld [vmem:[%s1 + $0x88] sm:$0xff]
  %v131 = vld [vmem:[%s1 + $0x90] sm:$0xff]
  %v132 = vld [vmem:[%s1 + $0x98] sm:$0xff]
  %v133 = vld [vmem:[%s1 + $0xa0] sm:$0xff]
  %v134 = vld [vmem:[%s1 + $0xa8] sm:$0xff]
  %v135 = vld [vmem:[%s1 + $0xb0] sm:$0xff]
  %v136 = vld [vmem:[%s1 + $0xb8] sm:$0xff]
  %v137 = vld [vmem:[%s1 + $0xc0] sm:$0xff]
  %v138 = vld [vmem:[%s1 + $0xc8] sm:$0xff]
  %v139 = vld [vmem:[%s1 + $0xd0] sm:$0xff]
  %v140 = vld [vmem:[%s1 + $0xd8] sm:$0xff]
  %v141 = vld [vmem:[%s1 + $0xe0] sm:$0xff]
  %v142 = vld [vmem:[%s1 + $0xe8] sm:$0xff]
  %v143 = vld [vmem:[%s1 + $0xf0] sm:$0xff]
  %v144 = vld [vmem:[%s1 + $0xf8] sm:$0xff]
  %v177 = vunpack.c.l.b16 %v113
  %v178 = vunpack.c.h.b16 %v113
  %v179 = vunpack.c.l.b16 %v114
  %v180 = vunpack.c.h.b16 %v114
  %v181 = vunpack.c.l.b16 %v115
  %v182 = vunpack.c.h.b16 %v115
  %v183 = vunpack.c.l.b16 %v116
  %v184 = vunpack.c.h.b16 %v116
  %v185 = vunpack.c.l.b16 %v117
  %v186 = vunpack.c.h.b16 %v117
  %v187 = vunpack.c.l.b16 %v118
  %v188 = vunpack.c.h.b16 %v118
  %v189 = vunpack.c.l.b16 %v119
  %v190 = vunpack.c.h.b16 %v119
  %v191 = vunpack.c.l.b16 %v120
  %v192 = vunpack.c.h.b16 %v120
  %v193 = vunpack.c.l.b16 %v121
  %v194 = vunpack.c.h.b16 %v121
  %v195 = vunpack.c.l.b16 %v122
  %v196 = vunpack.c.h.b16 %v122
  %v197 = vunpack.c.l.b16 %v123
  %v198 = vunpack.c.h.b16 %v123
  %v199 = vunpack.c.l.b16 %v124
  %v200 = vunpack.c.h.b16 %v124
  %v201 = vunpack.c.l.b16 %v125
  %v202 = vunpack.c.h.b16 %v125
  %v203 = vunpack.c.l.b16 %v126
  %v204 = vunpack.c.h.b16 %v126
  %v205 = vunpack.c.l.b16 %v127
  %v206 = vunpack.c.h.b16 %v127
  %v207 = vunpack.c.l.b16 %v128
  %v208 = vunpack.c.h.b16 %v128
  %v209 = vunpack.c.l.b16 %v129
  %v210 = vunpack.c.h.b16 %v129
  %v211 = vunpack.c.l.b16 %v130
  %v212 = vunpack.c.h.b16 %v130
  %v213 = vunpack.c.l.b16 %v131
  %v214 = vunpack.c.h.b16 %v131
  %v215 = vunpack.c.l.b16 %v132
  %v216 = vunpack.c.h.b16 %v132
  %v217 = vunpack.c.l.b16 %v133
  %v218 = vunpack.c.h.b16 %v133
  %v219 = vunpack.c.l.b16 %v134
  %v220 = vunpack.c.h.b16 %v134
  %v221 = vunpack.c.l.b16 %v135
  %v222 = vunpack.c.h.b16 %v135
  %v223 = vunpack.c.l.b16 %v136
  %v224 = vunpack.c.h.b16 %v136
  %v225 = vunpack.c.l.b16 %v137
  %v226 = vunpack.c.h.b16 %v137
  %v227 = vunpack.c.l.b16 %v138
  %v228 = vunpack.c.h.b16 %v138
  %v229 = vunpack.c.l.b16 %v139
  %v230 = vunpack.c.h.b16 %v139
  %v231 = vunpack.c.l.b16 %v140
  %v232 = vunpack.c.h.b16 %v140
  %v233 = vunpack.c.l.b16 %v141
  %v234 = vunpack.c.h.b16 %v141
  %v235 = vunpack.c.l.b16 %v142
  %v236 = vunpack.c.h.b16 %v142
  %v237 = vunpack.c.l.b16 %v143
  %v238 = vunpack.c.h.b16 %v143
  %v239 = vunpack.c.l.b16 %v144
  %v240 = vunpack.c.h.b16 %v144
  %v241 = vpack.c.b16 %v179, %v177
  %v242 = vpack.c.b16 %v180, %v178
  %v243 = vpack.c.b16 %v183, %v181
  %v244 = vpack.c.b16 %v184, %v182
  %v245 = vpack.c.b16 %v187, %v185
  %v246 = vpack.c.b16 %v188, %v186
  %v247 = vpack.c.b16 %v191, %v189
  %v248 = vpack.c.b16 %v192, %v190
  %v249 = vpack.c.b16 %v195, %v193
  %v250 = vpack.c.b16 %v196, %v194
  %v251 = vpack.c.b16 %v199, %v197
  %v252 = vpack.c.b16 %v200, %v198
  %v253 = vpack.c.b16 %v203, %v201
  %v254 = vpack.c.b16 %v204, %v202
  %v255 = vpack.c.b16 %v207, %v205
  %v256 = vpack.c.b16 %v208, %v206
  %v257 = vpack.c.b16 %v211, %v209
  %v258 = vpack.c.b16 %v212, %v210
  %v259 = vpack.c.b16 %v215, %v213
  %v260 = vpack.c.b16 %v216, %v214
  %v261 = vpack.c.b16 %v219, %v217
  %v262 = vpack.c.b16 %v220, %v218
  %v263 = vpack.c.b16 %v223, %v221
  %v264 = vpack.c.b16 %v224, %v222
  %v265 = vpack.c.b16 %v227, %v225
  %v266 = vpack.c.b16 %v228, %v226
  %v267 = vpack.c.b16 %v231, %v229
  %v268 = vpack.c.b16 %v232, %v230
  %v269 = vpack.c.b16 %v235, %v233
  %v270 = vpack.c.b16 %v236, %v234
  %v271 = vpack.c.b16 %v239, %v237
  %v272 = vpack.c.b16 %v240, %v238
  %305 = vmatprep.subr.bf16.mxu0 %v256
  %306 = vmatpush1.bf16.msra.mxu0 %v255
  %307 = vmatprep.subr.bf16.mxu0 %v254
  %308 = vmatpush1.bf16.msra.mxu0 %v253
  %309 = vmatprep.subr.bf16.mxu0 %v252
  %310 = vmatpush1.bf16.msra.mxu0 %v251
  %311 = vmatprep.subr.bf16.mxu0 %v250
  %312 = vmatpush1.bf16.msra.mxu0 %v249
  %313 = vmatprep.subr.bf16.mxu0 %v248
  %314 = vmatpush1.bf16.msra.mxu0 %v247
  %315 = vmatprep.subr.bf16.mxu0 %v246
  %316 = vmatpush1.bf16.msra.mxu0 %v245
  %317 = vmatprep.subr.bf16.mxu0 %v244
  %318 = vmatpush1.bf16.msra.mxu0 %v243
  %319 = vmatprep.subr.bf16.mxu0 %v242
  %320 = vmatpush1.bf16.msra.mxu0 %v241
  %321 = vmatprep.subr.bf16.mxu0 %v272
  %322 = vmatpush2.bf16.msra.mxu0 %v271
  %323 = vmatprep.subr.bf16.mxu0 %v270
  %324 = vmatpush2.bf16.msra.mxu0 %v269
  %325 = vmatprep.subr.bf16.mxu0 %v268
  %326 = vmatpush2.bf16.msra.mxu0 %v267
  %327 = vmatprep.subr.bf16.mxu0 %v266
  %328 = vmatpush2.bf16.msra.mxu0 %v265
  %329 = vmatprep.subr.bf16.mxu0 %v264
  %330 = vmatpush2.bf16.msra.mxu0 %v263
  %331 = vmatprep.subr.bf16.mxu0 %v262
  %332 = vmatpush2.bf16.msra.mxu0 %v261
  %333 = vmatprep.subr.bf16.mxu0 %v260
  %334 = vmatpush2.bf16.msra.mxu0 %v259
  %335 = vmatprep.subr.bf16.mxu0 %v258
  %336 = vmatpush2.bf16.msra.mxu0 %v257
  %337 = vmatprep.mubr.bf16.mxu0 %v82
  %338 = vmatmul.mubr.bf16.gmra.mxu0 %v81
  %v339 = vpop.f32.mrf.mxu0
  %v340 = vadd.f32 0.0, %v339
  %v341 = vpop.f32.mrf.mxu0
  %v342 = vadd.f32 0.0, %v341
  %v343 = vpop.f32.mrf.mxu0
  %v344 = vadd.f32 0.0, %v343
  %v345 = vpop.f32.mrf.mxu0
  %v346 = vadd.f32 0.0, %v345
  %347 = vmatprep.mubr.bf16.mxu0 %v84
  %348 = vmatmul.mubr.bf16.gmra.mxu0 %v83
  %v349 = vpop.f32.mrf.mxu0
  %v350 = vadd.f32 0.0, %v349
  %v351 = vpop.f32.mrf.mxu0
  %v352 = vadd.f32 0.0, %v351
  %v353 = vpop.f32.mrf.mxu0
  %v354 = vadd.f32 0.0, %v353
  %v355 = vpop.f32.mrf.mxu0
  %v356 = vadd.f32 0.0, %v355
  %357 = vmatprep.mubr.bf16.mxu0 %v86
  %358 = vmatmul.mubr.bf16.gmra.mxu0 %v85
  %v359 = vpop.f32.mrf.mxu0
  %v360 = vadd.f32 0.0, %v359
  %v361 = vpop.f32.mrf.mxu0
  %v362 = vadd.f32 0.0, %v361
  %v363 = vpop.f32.mrf.mxu0
  %v364 = vadd.f32 0.0, %v363
  %v365 = vpop.f32.mrf.mxu0
  %v366 = vadd.f32 0.0, %v365
  %367 = vmatprep.mubr.bf16.mxu0 %v88
  %368 = vmatmul.mubr.bf16.gmra.mxu0 %v87
  %v369 = vpop.f32.mrf.mxu0
  %v370 = vadd.f32 0.0, %v369
  %v371 = vpop.f32.mrf.mxu0
  %v372 = vadd.f32 0.0, %v371
  %v373 = vpop.f32.mrf.mxu0
  %v374 = vadd.f32 0.0, %v373
  %v375 = vpop.f32.mrf.mxu0
  %v376 = vadd.f32 0.0, %v375
  %377 = vmatprep.mubr.bf16.mxu0 %v90
  %378 = vmatmul.mubr.bf16.gmra.mxu0 %v89
  %v379 = vpop.f32.mrf.mxu0
  %v380 = vadd.f32 0.0, %v379
  %v381 = vpop.f32.mrf.mxu0
  %v382 = vadd.f32 0.0, %v381
  %v383 = vpop.f32.mrf.mxu0
  %v384 = vadd.f32 0.0, %v383
  %v385 = vpop.f32.mrf.mxu0
  %v386 = vadd.f32 0.0, %v385
  %387 = vmatprep.mubr.bf16.mxu0 %v92
  %388 = vmatmul.mubr.bf16.gmra.mxu0 %v91
  %v389 = vpop.f32.mrf.mxu0
  %v390 = vadd.f32 0.0, %v389
  %v391 = vpop.f32.mrf.mxu0
  %v392 = vadd.f32 0.0, %v391
  %v393 = vpop.f32.mrf.mxu0
  %v394 = vadd.f32 0.0, %v393
  %v395 = vpop.f32.mrf.mxu0
  %v396 = vadd.f32 0.0, %v395
  %397 = vmatprep.mubr.bf16.mxu0 %v94
  %398 = vmatmul.mubr.bf16.gmra.mxu0 %v93
  %v399 = vpop.f32.mrf.mxu0
  %v400 = vadd.f32 0.0, %v399
  %v401 = vpop.f32.mrf.mxu0
  %v402 = vadd.f32 0.0, %v401
  %v403 = vpop.f32.mrf.mxu0
  %v404 = vadd.f32 0.0, %v403
  %v405 = vpop.f32.mrf.mxu0
  %v406 = vadd.f32 0.0, %v405
  %407 = vmatprep.mubr.bf16.mxu0 %v96
  %408 = vmatmul.mubr.bf16.gmra.mxu0 %v95
  %v409 = vpop.f32.mrf.mxu0
  %v410 = vadd.f32 0.0, %v409
  %v411 = vpop.f32.mrf.mxu0
  %v412 = vadd.f32 0.0, %v411
  %v413 = vpop.f32.mrf.mxu0
  %v414 = vadd.f32 0.0, %v413
  %v415 = vpop.f32.mrf.mxu0
  %v416 = vadd.f32 0.0, %v415
  %417 = vmatprep.mubr.bf16.mxu0 %v98
  %418 = vmatmul.mubr.bf16.gmra.mxu0 %v97
  %v419 = vpop.f32.mrf.mxu0
  %v420 = vadd.f32 0.0, %v419
  %v421 = vpop.f32.mrf.mxu0
  %v422 = vadd.f32 0.0, %v421
  %v423 = vpop.f32.mrf.mxu0
  %v424 = vadd.f32 0.0, %v423
  %v425 = vpop.f32.mrf.mxu0
  %v426 = vadd.f32 0.0, %v425
  %427 = vmatprep.mubr.bf16.mxu0 %v100
  %428 = vmatmul.mubr.bf16.gmra.mxu0 %v99
  %v429 = vpop.f32.mrf.mxu0
  %v430 = vadd.f32 0.0, %v429
  %v431 = vpop.f32.mrf.mxu0
  %v432 = vadd.f32 0.0, %v431
  %v433 = vpop.f32.mrf.mxu0
  %v434 = vadd.f32 0.0, %v433
  %v435 = vpop.f32.mrf.mxu0
  %v436 = vadd.f32 0.0, %v435
  %437 = vmatprep.mubr.bf16.mxu0 %v102
  %438 = vmatmul.mubr.bf16.gmra.mxu0 %v101
  %v439 = vpop.f32.mrf.mxu0
  %v440 = vadd.f32 0.0, %v439
  %v441 = vpop.f32.mrf.mxu0
  %v442 = vadd.f32 0.0, %v441
  %v443 = vpop.f32.mrf.mxu0
  %v444 = vadd.f32 0.0, %v443
  %v445 = vpop.f32.mrf.mxu0
  %v446 = vadd.f32 0.0, %v445
  %447 = vmatprep.mubr.bf16.mxu0 %v104
  %448 = vmatmul.mubr.bf16.gmra.mxu0 %v103
  %v449 = vpop.f32.mrf.mxu0
  %v450 = vadd.f32 0.0, %v449
  %v451 = vpop.f32.mrf.mxu0
  %v452 = vadd.f32 0.0, %v451
  %v453 = vpop.f32.mrf.mxu0
  %v454 = vadd.f32 0.0, %v453
  %v455 = vpop.f32.mrf.mxu0
  %v456 = vadd.f32 0.0, %v455
  %457 = vmatprep.mubr.bf16.mxu0 %v106
  %458 = vmatmul.mubr.bf16.gmra.mxu0 %v105
  %v459 = vpop.f32.mrf.mxu0
  %v460 = vadd.f32 0.0, %v459
  %v461 = vpop.f32.mrf.mxu0
  %v462 = vadd.f32 0.0, %v461
  %v463 = vpop.f32.mrf.mxu0
  %v464 = vadd.f32 0.0, %v463
  %v465 = vpop.f32.mrf.mxu0
  %v466 = vadd.f32 0.0, %v465
  %467 = vmatprep.mubr.bf16.mxu0 %v108
  %468 = vmatmul.mubr.bf16.gmra.mxu0 %v107
  %v469 = vpop.f32.mrf.mxu0
  %v470 = vadd.f32 0.0, %v469
  %v471 = vpop.f32.mrf.mxu0
  %v472 = vadd.f32 0.0, %v471
  %v473 = vpop.f32.mrf.mxu0
  %v474 = vadd.f32 0.0, %v473
  %v475 = vpop.f32.mrf.mxu0
  %v476 = vadd.f32 0.0, %v475
  %477 = vmatprep.mubr.bf16.mxu0 %v110
  %478 = vmatmul.mubr.bf16.gmra.mxu0 %v109
  %v479 = vpop.f32.mrf.mxu0
  %v480 = vadd.f32 0.0, %v479
  %v481 = vpop.f32.mrf.mxu0
  %v482 = vadd.f32 0.0, %v481
  %v483 = vpop.f32.mrf.mxu0
  %v484 = vadd.f32 0.0, %v483
  %v485 = vpop.f32.mrf.mxu0
  %v486 = vadd.f32 0.0, %v485
  %487 = vmatprep.mubr.bf16.mxu0 %v112
  %488 = vmatmul.mubr.bf16.gmra.mxu0 %v111
  %v489 = vpop.f32.mrf.mxu0
  %v490 = vadd.f32 0.0, %v489
  %v491 = vpop.f32.mrf.mxu0
  %v492 = vadd.f32 0.0, %v491
  %v493 = vpop.f32.mrf.mxu0
  %v494 = vadd.f32 0.0, %v493
  %v495 = vpop.f32.mrf.mxu0
  %v496 = vadd.f32 0.0, %v495
  %497 = vdwg.mxu0
  %v498 = vld [vmem:[%s3] sm:$0xff]
  %v499 = vld [vmem:[%s3 + $0x8] sm:$0xff]
  %v500 = vld [vmem:[%s3 + $0x10] sm:$0xff]
  %v501 = vld [vmem:[%s3 + $0x18] sm:$0xff]
  %v502 = vld [vmem:[%s3 + $0x20] sm:$0xff]
  %v503 = vld [vmem:[%s3 + $0x28] sm:$0xff]
  %v504 = vld [vmem:[%s3 + $0x30] sm:$0xff]
  %v505 = vld [vmem:[%s3 + $0x38] sm:$0xff]
  %v506 = vld [vmem:[%s3 + $0x40] sm:$0xff]
  %v507 = vld [vmem:[%s3 + $0x48] sm:$0xff]
  %v508 = vld [vmem:[%s3 + $0x50] sm:$0xff]
  %v509 = vld [vmem:[%s3 + $0x58] sm:$0xff]
  %v510 = vld [vmem:[%s3 + $0x60] sm:$0xff]
  %v511 = vld [vmem:[%s3 + $0x68] sm:$0xff]
  %v512 = vld [vmem:[%s3 + $0x70] sm:$0xff]
  %v513 = vld [vmem:[%s3 + $0x78] sm:$0xff]
  %v514 = vld [vmem:[%s3 + $0x80] sm:$0xff]
  %v515 = vld [vmem:[%s3 + $0x88] sm:$0xff]
  %v516 = vld [vmem:[%s3 + $0x90] sm:$0xff]
  %v517 = vld [vmem:[%s3 + $0x98] sm:$0xff]
  %v518 = vld [vmem:[%s3 + $0xa0] sm:$0xff]
  %v519 = vld [vmem:[%s3 + $0xa8] sm:$0xff]
  %v520 = vld [vmem:[%s3 + $0xb0] sm:$0xff]
  %v521 = vld [vmem:[%s3 + $0xb8] sm:$0xff]
  %v522 = vld [vmem:[%s3 + $0xc0] sm:$0xff]
  %v523 = vld [vmem:[%s3 + $0xc8] sm:$0xff]
  %v524 = vld [vmem:[%s3 + $0xd0] sm:$0xff]
  %v525 = vld [vmem:[%s3 + $0xd8] sm:$0xff]
  %v526 = vld [vmem:[%s3 + $0xe0] sm:$0xff]
  %v527 = vld [vmem:[%s3 + $0xe8] sm:$0xff]
  %v528 = vld [vmem:[%s3 + $0xf0] sm:$0xff]
  %v529 = vld [vmem:[%s3 + $0xf8] sm:$0xff]
  %v530 = vld [vmem:[%s3 + $0x100] sm:$0xff]
  %v531 = vld [vmem:[%s3 + $0x108] sm:$0xff]
  %v532 = vld [vmem:[%s3 + $0x110] sm:$0xff]
  %v533 = vld [vmem:[%s3 + $0x118] sm:$0xff]
  %v534 = vld [vmem:[%s3 + $0x120] sm:$0xff]
  %v535 = vld [vmem:[%s3 + $0x128] sm:$0xff]
  %v536 = vld [vmem:[%s3 + $0x130] sm:$0xff]
  %v537 = vld [vmem:[%s3 + $0x138] sm:$0xff]
  %v538 = vld [vmem:[%s3 + $0x140] sm:$0xff]
  %v539 = vld [vmem:[%s3 + $0x148] sm:$0xff]
  %v540 = vld [vmem:[%s3 + $0x150] sm:$0xff]
  %v541 = vld [vmem:[%s3 + $0x158] sm:$0xff]
  %v542 = vld [vmem:[%s3 + $0x160] sm:$0xff]
  %v543 = vld [vmem:[%s3 + $0x168] sm:$0xff]
  %v544 = vld [vmem:[%s3 + $0x170] sm:$0xff]
  %v545 = vld [vmem:[%s3 + $0x178] sm:$0xff]
  %v546 = vld [vmem:[%s3 + $0x180] sm:$0xff]
  %v547 = vld [vmem:[%s3 + $0x188] sm:$0xff]
  %v548 = vld [vmem:[%s3 + $0x190] sm:$0xff]
  %v549 = vld [vmem:[%s3 + $0x198] sm:$0xff]
  %v550 = vld [vmem:[%s3 + $0x1a0] sm:$0xff]
  %v551 = vld [vmem:[%s3 + $0x1a8] sm:$0xff]
  %v552 = vld [vmem:[%s3 + $0x1b0] sm:$0xff]
  %v553 = vld [vmem:[%s3 + $0x1b8] sm:$0xff]
  %v554 = vld [vmem:[%s3 + $0x1c0] sm:$0xff]
  %v555 = vld [vmem:[%s3 + $0x1c8] sm:$0xff]
  %v556 = vld [vmem:[%s3 + $0x1d0] sm:$0xff]
  %v557 = vld [vmem:[%s3 + $0x1d8] sm:$0xff]
  %v558 = vld [vmem:[%s3 + $0x1e0] sm:$0xff]
  %v559 = vld [vmem:[%s3 + $0x1e8] sm:$0xff]
  %v560 = vld [vmem:[%s3 + $0x1f0] sm:$0xff]
  %v561 = vld [vmem:[%s3 + $0x1f8] sm:$0xff]
  %v562 = vld [vmem:[%s2] sm:$0x3]
  %v564 = vlaneseq
  %v565 = vshrl.u32 %v564, 7
  %v566 = vsub.s32 0, %v565
  %v567 = vrot.slane %v562, %v566
  %v568 = vlaneseq
  %v569 = vshrl.u32 %v568, 7
  %v570 = vsub.s32 1, %v569
  %v571 = vrot.slane %v562, %v570
  %v574 = vadd.f32 %v498, %v567
  %v575 = vadd.f32 %v499, %v571
  %v576 = vadd.f32 %v500, %v567
  %v577 = vadd.f32 %v501, %v571
  %v578 = vadd.f32 %v502, %v567
  %v579 = vadd.f32 %v503, %v571
  %v580 = vadd.f32 %v504, %v567
  %v581 = vadd.f32 %v505, %v571
  %v582 = vadd.f32 %v506, %v567
  %v583 = vadd.f32 %v507, %v571
  %v584 = vadd.f32 %v508, %v567
  %v585 = vadd.f32 %v509, %v571
  %v586 = vadd.f32 %v510, %v567
  %v587 = vadd.f32 %v511, %v571
  %v588 = vadd.f32 %v512, %v567
  %v589 = vadd.f32 %v513, %v571
  %v590 = vadd.f32 %v514, %v567
  %v591 = vadd.f32 %v515, %v571
  %v592 = vadd.f32 %v516, %v567
  %v593 = vadd.f32 %v517, %v571
  %v594 = vadd.f32 %v518, %v567
  %v595 = vadd.f32 %v519, %v571
  %v596 = vadd.f32 %v520, %v567
  %v597 = vadd.f32 %v521, %v571
  %v598 = vadd.f32 %v522, %v567
  %v599 = vadd.f32 %v523, %v571
  %v600 = vadd.f32 %v524, %v567
  %v601 = vadd.f32 %v525, %v571
  %v602 = vadd.f32 %v526, %v567
  %v603 = vadd.f32 %v527, %v571
  %v604 = vadd.f32 %v528, %v567
  %v605 = vadd.f32 %v529, %v571
  %v606 = vadd.f32 %v530, %v567
  %v607 = vadd.f32 %v531, %v571
  %v608 = vadd.f32 %v532, %v567
  %v609 = vadd.f32 %v533, %v571
  %v610 = vadd.f32 %v534, %v567
  %v611 = vadd.f32 %v535, %v571
  %v612 = vadd.f32 %v536, %v567
  %v613 = vadd.f32 %v537, %v571
  %v614 = vadd.f32 %v538, %v567
  %v615 = vadd.f32 %v539, %v571
  %v616 = vadd.f32 %v540, %v567
  %v617 = vadd.f32 %v541, %v571
  %v618 = vadd.f32 %v542, %v567
  %v619 = vadd.f32 %v543, %v571
  %v620 = vadd.f32 %v544, %v567
  %v621 = vadd.f32 %v545, %v571
  %v622 = vadd.f32 %v546, %v567
  %v623 = vadd.f32 %v547, %v571
  %v624 = vadd.f32 %v548, %v567
  %v625 = vadd.f32 %v549, %v571
  %v626 = vadd.f32 %v550, %v567
  %v627 = vadd.f32 %v551, %v571
  %v628 = vadd.f32 %v552, %v567
  %v629 = vadd.f32 %v553, %v571
  %v630 = vadd.f32 %v554, %v567
  %v631 = vadd.f32 %v555, %v571
  %v632 = vadd.f32 %v556, %v567
  %v633 = vadd.f32 %v557, %v571
  %v634 = vadd.f32 %v558, %v567
  %v635 = vadd.f32 %v559, %v571
  %v636 = vadd.f32 %v560, %v567
  %v637 = vadd.f32 %v561, %v571
  %v638 = vadd.f32 %v574, %v340
  %v639 = vadd.f32 %v575, %v342
  %v640 = vadd.f32 %v576, %v344
  %v641 = vadd.f32 %v577, %v346
  %v642 = vadd.f32 %v578, %v350
  %v643 = vadd.f32 %v579, %v352
  %v644 = vadd.f32 %v580, %v354
  %v645 = vadd.f32 %v581, %v356
  %v646 = vadd.f32 %v582, %v360
  %v647 = vadd.f32 %v583, %v362
  %v648 = vadd.f32 %v584, %v364
  %v649 = vadd.f32 %v585, %v366
  %v650 = vadd.f32 %v586, %v370
  %v651 = vadd.f32 %v587, %v372
  %v652 = vadd.f32 %v588, %v374
  %v653 = vadd.f32 %v589, %v376
  %v654 = vadd.f32 %v590, %v380
  %v655 = vadd.f32 %v591, %v382
  %v656 = vadd.f32 %v592, %v384
  %v657 = vadd.f32 %v593, %v386
  %v658 = vadd.f32 %v594, %v390
  %v659 = vadd.f32 %v595, %v392
  %v660 = vadd.f32 %v596, %v394
  %v661 = vadd.f32 %v597, %v396
  %v662 = vadd.f32 %v598, %v400
  %v663 = vadd.f32 %v599, %v402
  %v664 = vadd.f32 %v600, %v404
  %v665 = vadd.f32 %v601, %v406
  %v666 = vadd.f32 %v602, %v410
  %v667 = vadd.f32 %v603, %v412
  %v668 = vadd.f32 %v604, %v414
  %v669 = vadd.f32 %v605, %v416
  %v670 = vadd.f32 %v606, %v420
  %v671 = vadd.f32 %v607, %v422
  %v672 = vadd.f32 %v608, %v424
  %v673 = vadd.f32 %v609, %v426
  %v674 = vadd.f32 %v610, %v430
  %v675 = vadd.f32 %v611, %v432
  %v676 = vadd.f32 %v612, %v434
  %v677 = vadd.f32 %v613, %v436
  %v678 = vadd.f32 %v614, %v440
  %v679 = vadd.f32 %v615, %v442
  %v680 = vadd.f32 %v616, %v444
  %v681 = vadd.f32 %v617, %v446
  %v682 = vadd.f32 %v618, %v450
  %v683 = vadd.f32 %v619, %v452
  %v684 = vadd.f32 %v620, %v454
  %v685 = vadd.f32 %v621, %v456
  %v686 = vadd.f32 %v622, %v460
  %v687 = vadd.f32 %v623, %v462
  %v688 = vadd.f32 %v624, %v464
  %v689 = vadd.f32 %v625, %v466
  %v690 = vadd.f32 %v626, %v470
  %v691 = vadd.f32 %v627, %v472
  %v692 = vadd.f32 %v628, %v474
  %v693 = vadd.f32 %v629, %v476
  %v694 = vadd.f32 %v630, %v480
  %v695 = vadd.f32 %v631, %v482
  %v696 = vadd.f32 %v632, %v484
  %v697 = vadd.f32 %v633, %v486
  %v698 = vadd.f32 %v634, %v490
  %v699 = vadd.f32 %v635, %v492
  %v700 = vadd.f32 %v636, %v494
  %v701 = vadd.f32 %v637, %v496
  %702 = vst [vmem:[%s4] sm:$0xff] %v638
  %703 = vst [vmem:[%s4 + $0x8] sm:$0xff] %v639
  %704 = vst [vmem:[%s4 + $0x10] sm:$0xff] %v640
  %705 = vst [vmem:[%s4 + $0x18] sm:$0xff] %v641
  %706 = vst [vmem:[%s4 + $0x20] sm:$0xff] %v642
  %707 = vst [vmem:[%s4 + $0x28] sm:$0xff] %v643
  %708 = vst [vmem:[%s4 + $0x30] sm:$0xff] %v644
  %709 = vst [vmem:[%s4 + $0x38] sm:$0xff] %v645
  %710 = vst [vmem:[%s4 + $0x40] sm:$0xff] %v646
  %711 = vst [vmem:[%s4 + $0x48] sm:$0xff] %v647
  %712 = vst [vmem:[%s4 + $0x50] sm:$0xff] %v648
  %713 = vst [vmem:[%s4 + $0x58] sm:$0xff] %v649
  %714 = vst [vmem:[%s4 + $0x60] sm:$0xff] %v650
  %715 = vst [vmem:[%s4 + $0x68] sm:$0xff] %v651
  %716 = vst [vmem:[%s4 + $0x70] sm:$0xff] %v652
  %717 = vst [vmem:[%s4 + $0x78] sm:$0xff] %v653
  %718 = vst [vmem:[%s4 + $0x80] sm:$0xff] %v654
  %719 = vst [vmem:[%s4 + $0x88] sm:$0xff] %v655
  %720 = vst [vmem:[%s4 + $0x90] sm:$0xff] %v656
  %721 = vst [vmem:[%s4 + $0x98] sm:$0xff] %v657
  %722 = vst [vmem:[%s4 + $0xa0] sm:$0xff] %v658
  %723 = vst [vmem:[%s4 + $0xa8] sm:$0xff] %v659
  %724 = vst [vmem:[%s4 + $0xb0] sm:$0xff] %v660
  %725 = vst [vmem:[%s4 + $0xb8] sm:$0xff] %v661
  %726 = vst [vmem:[%s4 + $0xc0] sm:$0xff] %v662
  %727 = vst [vmem:[%s4 + $0xc8] sm:$0xff] %v663
  %728 = vst [vmem:[%s4 + $0xd0] sm:$0xff] %v664
  %729 = vst [vmem:[%s4 + $0xd8] sm:$0xff] %v665
  %730 = vst [vmem:[%s4 + $0xe0] sm:$0xff] %v666
  %731 = vst [vmem:[%s4 + $0xe8] sm:$0xff] %v667
  %732 = vst [vmem:[%s4 + $0xf0] sm:$0xff] %v668
  %733 = vst [vmem:[%s4 + $0xf8] sm:$0xff] %v669
  %734 = vst [vmem:[%s4 + $0x100] sm:$0xff] %v670
  %735 = vst [vmem:[%s4 + $0x108] sm:$0xff] %v671
  %736 = vst [vmem:[%s4 + $0x110] sm:$0xff] %v672
  %737 = vst [vmem:[%s4 + $0x118] sm:$0xff] %v673
  %738 = vst [vmem:[%s4 + $0x120] sm:$0xff] %v674
  %739 = vst [vmem:[%s4 + $0x128] sm:$0xff] %v675
  %740 = vst [vmem:[%s4 + $0x130] sm:$0xff] %v676
  %741 = vst [vmem:[%s4 + $0x138] sm:$0xff] %v677
  %742 = vst [vmem:[%s4 + $0x140] sm:$0xff] %v678
  %743 = vst [vmem:[%s4 + $0x148] sm:$0xff] %v679
  %744 = vst [vmem:[%s4 + $0x150] sm:$0xff] %v680
  %745 = vst [vmem:[%s4 + $0x158] sm:$0xff] %v681
  %746 = vst [vmem:[%s4 + $0x160] sm:$0xff] %v682
  %747 = vst [vmem:[%s4 + $0x168] sm:$0xff] %v683
  %748 = vst [vmem:[%s4 + $0x170] sm:$0xff] %v684
  %749 = vst [vmem:[%s4 + $0x178] sm:$0xff] %v685
  %750 = vst [vmem:[%s4 + $0x180] sm:$0xff] %v686
  %751 = vst [vmem:[%s4 + $0x188] sm:$0xff] %v687
  %752 = vst [vmem:[%s4 + $0x190] sm:$0xff] %v688
  %753 = vst [vmem:[%s4 + $0x198] sm:$0xff] %v689
  %754 = vst [vmem:[%s4 + $0x1a0] sm:$0xff] %v690
  %755 = vst [vmem:[%s4 + $0x1a8] sm:$0xff] %v691
  %756 = vst [vmem:[%s4 + $0x1b0] sm:$0xff] %v692
  %757 = vst [vmem:[%s4 + $0x1b8] sm:$0xff] %v693
  %758 = vst [vmem:[%s4 + $0x1c0] sm:$0xff] %v694
  %759 = vst [vmem:[%s4 + $0x1c8] sm:$0xff] %v695
  %760 = vst [vmem:[%s4 + $0x1d0] sm:$0xff] %v696
  %761 = vst [vmem:[%s4 + $0x1d8] sm:$0xff] %v697
  %762 = vst [vmem:[%s4 + $0x1e0] sm:$0xff] %v698
  %763 = vst [vmem:[%s4 + $0x1e8] sm:$0xff] %v699
  %764 = vst [vmem:[%s4 + $0x1f0] sm:$0xff] %v700
  %765 = vst [vmem:[%s4 + $0x1f8] sm:$0xff] %v701
  // Predicated region
  $region18: #{compensation_block_forward.1} parent=0 // pred_check
    _
  $region19: #{compensation_block_forward.1} parent=0 // pred_check_branch
    %767 = sbr.rel (0) target = $region21
  $region20: #{compensation_block_forward.1} parent=0 // pred_region
    _
  $region21: #{compensation_block_forward.1} parent=0 // pred_fallthru
    _
  // Predicated region
  $region22: #{compensation_block_forward.1} parent=0 // pred_check
    _
  $region23: #{compensation_block_forward.1} parent=0 // pred_check_branch
    %769 = sbr.rel (0) target = $region25
  $region24: #{compensation_block_forward.1} parent=0 // pred_region
    _
  $region25: #{compensation_block_forward.1} parent=0 // pred_fallthru
    _

</llo_original>
